<compile_context>
chip_gen: v5e
topology: v5e:2x2
jax: 0.10.0
libtpu: 0.0.40
codegen_flags: <defaults>
</compile_context>

<pallas_src>
from math import prod

import jax
import jax.numpy as jnp
from jax.experimental import pallas as pl
from jax.experimental.pallas import tpu as pltpu


# ---------------------------------------------------------------------------
# Kernel: works for both 3-D blocks (TR, 2, TC) and 4-D blocks (TP, 2, TC, TQ).
# Axis 1 of the block always carries the two GLU halves.
# ---------------------------------------------------------------------------
def _glu_kernel(x_ref, o_ref):
    x = x_ref[...]
    a = x[:, 0].astype(jnp.float32)      # "out" half
    g = x[:, 1].astype(jnp.float32)      # "gate" half
    o_ref[...] = (a * jax.nn.sigmoid(g)).astype(o_ref.dtype)


# ---------------------------------------------------------------------------
# Tile-size helper: largest t <= cap that divides n and is a multiple of `unit`;
# falls back to n itself (full dim is always a legal block extent).
# ---------------------------------------------------------------------------
def _pick_tile(n, unit, cap):
    cap = max(1, min(n, cap))
    t = (cap // unit) * unit
    while t >= unit:
        if n % t == 0:
            return t
        t -= unit
    return n


# Elements-per-block budget (f32): block in ~2 MiB + out ~1 MiB, double-buffered
# ~6 MiB -> comfortably inside the default scoped-VMEM limit on v5e/v6e/v7x.
_ELEMS_PER_BLOCK = 256 * 1024


def glu(x, dim=-1):
    """Pallas TPU GLU: split x in half along `dim`, return out * sigmoid(gate)."""
    ndim = x.ndim
    dim = dim % ndim
    two_c = x.shape[dim]
    if two_c % 2 != 0:
        raise ValueError(f"GLU split dim must be even, got {two_c}")
    C = two_c // 2

    lead = x.shape[:dim]
    trail = x.shape[dim + 1:]
    P = prod(lead) if lead else 1
    Q = prod(trail) if trail else 1
    out_shape_final = lead + (C,) + trail

    itemsize = jnp.dtype(x.dtype).itemsize
    sublane = 8 * max(1, 4 // itemsize)   # 8 for f32, 16 for bf16, 32 for int8

    if Q == 1:
        # ---- split along the last axis: lanes come from C --------------------
        R = P
        x3 = x.reshape(R, 2, C)
        TC = _pick_tile(C, 128, 2048)                       # lane tile
        TR = _pick_tile(R, sublane, max(sublane, _ELEMS_PER_BLOCK // max(TC, 1)))
        grid = (R // TR, C // TC)
        out = pl.pallas_call(
            _glu_kernel,
            out_shape=jax.ShapeDtypeStruct((R, C), x.dtype),
            grid_spec=pltpu.PrefetchScalarGridSpec(
                num_scalar_prefetch=0,
                grid=grid,
                in_specs=[pl.BlockSpec((TR, 2, TC), lambda r, c: (r, 0, c))],
                out_specs=pl.BlockSpec((TR, TC), lambda r, c: (r, c)),
            ),
            compiler_params=pltpu.CompilerParams(
                dimension_semantics=("parallel", "parallel")),
        )(x3)
        return out.reshape(out_shape_final)

    # ---- split along a middle axis (pcmer GLU(dim=1)): lanes come from Q -----
    x4 = x.reshape(P, 2, C, Q)
    TQ = _pick_tile(Q, 128, 2048)                           # lane tile
    TC = _pick_tile(C, sublane, max(sublane, _ELEMS_PER_BLOCK // TQ))
    TP = 1
    if TC == C and TQ == Q:
        # whole (2, C, Q) slab is small -> batch several leading slices per step
        TP = _pick_tile(P, 1, max(1, _ELEMS_PER_BLOCK // max(2 * C * Q, 1)))
    grid = (P // TP, C // TC, Q // TQ)
    out = pl.pallas_call(
        _glu_kernel,
        out_shape=jax.ShapeDtypeStruct((P, C, Q), x.dtype),
        grid_spec=pltpu.PrefetchScalarGridSpec(
            num_scalar_prefetch=0,
            grid=grid,
            in_specs=[pl.BlockSpec((TP, 2, TC, TQ), lambda p, c, q: (p, 0, c, q))],
            out_specs=pl.BlockSpec((TP, TC, TQ), lambda p, c, q: (p, c, q)),
        ),
        compiler_params=pltpu.CompilerParams(
            dimension_semantics=("parallel", "parallel", "parallel")),
    )(x4)
    return out.reshape(out_shape_final)


# ---------------------------------------------------------------------------
# Pure-JAX reference (mirrors the PyTorch forward).
# ---------------------------------------------------------------------------
def _glu_ref(x, dim):
    a, g = jnp.split(x, 2, axis=dim)
    return a * jax.nn.sigmoid(g)


if __name__ == "__main__":
    key = jax.random.PRNGKey(0)
    k1, k2 = jax.random.split(key)

    # Case 1: pcmer ConformerConvModule usage — GLU(dim=1) on [batch, 2*channels, seq].
    x1 = jax.random.normal(k1, (2, 64, 128), dtype=jnp.float32)   # channels = 2*32
    out1 = jax.block_until_ready(glu(x1, dim=1))
    ref1 = _glu_ref(x1, dim=1)
    assert out1.shape == ref1.shape == (2, 32, 128)
    assert jnp.allclose(out1, ref1, rtol=1e-5, atol=1e-5), "dim=1 mismatch vs reference"

    # Case 2: GLU along the last (hidden) dim — [batch, seq, 2*hidden].
    x2 = jax.random.normal(k2, (2, 8, 64), dtype=jnp.float32)     # hidden = 2*32
    out2 = jax.block_until_ready(glu(x2, dim=-1))
    ref2 = _glu_ref(x2, dim=-1)
    assert out2.shape == ref2.shape == (2, 8, 32)
    assert jnp.allclose(out2, ref2, rtol=1e-5, atol=1e-5), "dim=-1 mismatch vs reference"

    print("KERNEL_OK")
</pallas_src>

<mosaic_0001>
module attributes {stable_mosaic.version = 11 : i64} {
  func.func @_glu_kernel(%arg0: i32, %arg1: i32, %arg2: i32, %arg3: memref<2x2x32x128xf32, #tpu.memory_space<vmem>>, %arg4: memref<2x32x128xf32, #tpu.memory_space<vmem>>) attributes {dimension_semantics = [#tpu.dimension_semantics<parallel>, #tpu.dimension_semantics<parallel>, #tpu.dimension_semantics<parallel>], iteration_bounds = array<i64: 1, 1, 1>, scalar_prefetch = 0 : i64, scratch_operands = 0 : i64, tpu.core_type = #tpu.core_type<tc>, window_params = [{transform_indices = @transform_0, window_bounds = array<i64: 2, 2, 32, 128>}, {transform_indices = @transform_1, window_bounds = array<i64: 2, 32, 128>}]} {
    %c0 = arith.constant 0 : index
    %c0_0 = arith.constant 0 : index
    %c0_1 = arith.constant 0 : index
    %c0_2 = arith.constant 0 : index
    %0 = vector.load %arg3[%c0, %c0_0, %c0_1, %c0_2] : memref<2x2x32x128xf32, #tpu.memory_space<vmem>>, vector<2x2x32x128xf32>
    %1 = vector.extract_strided_slice %0 {offsets = [0, 0, 0, 0], sizes = [2, 1, 32, 128], strides = [1, 1, 1, 1]} : vector<2x2x32x128xf32> to vector<2x1x32x128xf32>
    %2 = vector.shape_cast %1 : vector<2x1x32x128xf32> to vector<2x32x128xf32>
    %3 = vector.extract_strided_slice %0 {offsets = [0, 1, 0, 0], sizes = [2, 1, 32, 128], strides = [1, 1, 1, 1]} : vector<2x2x32x128xf32> to vector<2x1x32x128xf32>
    %4 = vector.shape_cast %3 : vector<2x1x32x128xf32> to vector<2x32x128xf32>
    %5 = arith.negf %4 : vector<2x32x128xf32>
    %6 = math.exp %5 : vector<2x32x128xf32>
    %cst = arith.constant 1.000000e+00 : f32
    %7 = vector.broadcast %cst : f32 to vector<2x32x128xf32>
    %8 = arith.addf %7, %6 : vector<2x32x128xf32>
    %9 = arith.divf %7, %8 : vector<2x32x128xf32>
    %10 = arith.mulf %2, %9 : vector<2x32x128xf32>
    %c0_3 = arith.constant 0 : index
    %c0_4 = arith.constant 0 : index
    %c0_5 = arith.constant 0 : index
    %11 = vector.load %arg4[%c0_3, %c0_4, %c0_5] : memref<2x32x128xf32, #tpu.memory_space<vmem>>, vector<2x32x128xf32>
    tpu.vector_store %arg4[%c0_3, %c0_4, %c0_5], %10 {strides = array<i32>} : memref<2x32x128xf32, #tpu.memory_space<vmem>>, vector<2x32x128xf32>,
    return
  }
  func.func @transform_0(%arg0: i32, %arg1: i32, %arg2: i32) -> (i32, i32, i32, i32) {
    %c0_i32 = arith.constant 0 : i32
    %c0_i32_0 = arith.constant 0 : i32
    return %arg0, %c0_i32, %arg1, %arg2 : i32, i32, i32, i32
  }
  func.func @transform_1(%arg0: i32, %arg1: i32, %arg2: i32) -> (i32, i32, i32) {
    %c0_i32 = arith.constant 0 : i32
    return %arg0, %arg1, %arg2 : i32, i32, i32
  }
}

</mosaic_0001>

<llo_original>
// kernel: tpu_custom_call.1
$region0: #{tpu_custom_call.1}
  #allocation0 [shape = 'u32[]', space=smem, size = 0x4, offset = 0x4, fixed_abs, tag = 'smem constant byte address 0x4 - core index']
  #allocation1 [shape = 'u32[72,128]{1,0:T(1,128)}', space=vmem, size = 0x9000, scoped, tag = 'internal scratch']
  %s0 = inlined_call_operand.hbm [shape: f32[2,2,32,128], index: 0, kind: input, shape index: {}]
  %s1 = inlined_call_operand.hbm [shape: f32[2,32,128], index: 1, kind: output, shape index: {}]
  %s2 = sld [smem:[#allocation0]]
  $region18: #{tpu_custom_call.1} parent=0
    _
  %s4 = ssub.s32 1, %s2
  %s5 = scalar_select 0, %s4, %s2
  $region1: #{tpu_custom_call.1} parent=0
    #allocation2 [shape = 'u8[65536]{0}', space=vmem, size = 0x10000, scoped, tag = 'input window, operand 0, single buffered']
    #allocation3 [shape = 's32[1]{0}', space=sflag, size = 0x4, scoped, tag = 'scoped memory for tpu_custom_call.1']
    #allocation4 [shape = 's32[1]{0}', space=sflag, size = 0x4, scoped, tag = 'scoped memory for tpu_custom_call.1']
    #allocation5 [shape = 'u8[32768]{0}', space=vmem, size = 0x8000, scoped, tag = 'output window, operand 0, single buffered']
    %6 = vsyncpa [#allocation3], 0
    %7 = vsyncpa [#allocation4], 0
    // Predicated region
    $region2: #{tpu_custom_call.1} parent=1 // pred_check
      _
    $region3: #{tpu_custom_call.1} parent=1 // pred_check_branch
      %9 = sbr.rel (0) target = $region5
    $region4: #{tpu_custom_call.1} parent=1 // pred_region
      %11 = vsyncadd [#allocation3], 0
      %s12 = sshll.u32 %s0, 4
      %s13 = int_to_ptr.hbm [resolvable:$true] %s12
      %s14 = sshll.u32 [#allocation2], 4
      %s15 = int_to_ptr.vmem [resolvable:$true] %s14
      %20 = dma.hbm_to_vmem [thread:$0]  %s13, 2048, %s15, [#allocation3], 128, 128, 8
    $region5: #{tpu_custom_call.1} parent=1 // pred_fallthru
      _
    // Predicated region
    $region6: #{tpu_custom_call.1} parent=1 // pred_check
      _
    $region7: #{tpu_custom_call.1} parent=1 // pred_check_branch
      %22 = sbr.rel (0) target = $region9
    $region8: #{tpu_custom_call.1} parent=1 // pred_region
      %24 = dma.done [#allocation3], 2048
    $region9: #{tpu_custom_call.1} parent=1 // pred_fallthru
      _
    %v25 = vld [vmem:[#allocation2] sm:$0xff]
    %v26 = vld [vmem:[#allocation2 + $0x8] sm:$0xff]
    %v27 = vld [vmem:[#allocation2 + $0x10] sm:$0xff]
    %v28 = vld [vmem:[#allocation2 + $0x18] sm:$0xff]
    %v29 = vld [vmem:[#allocation2 + $0x20] sm:$0xff]
    %v30 = vld [vmem:[#allocation2 + $0x28] sm:$0xff]
    %v31 = vld [vmem:[#allocation2 + $0x30] sm:$0xff]
    %v32 = vld [vmem:[#allocation2 + $0x38] sm:$0xff]
    %v33 = vld [vmem:[#allocation2 + $0x40] sm:$0xff]
    %v34 = vld [vmem:[#allocation2 + $0x48] sm:$0xff]
    %v35 = vld [vmem:[#allocation2 + $0x50] sm:$0xff]
    %v36 = vld [vmem:[#allocation2 + $0x58] sm:$0xff]
    %v37 = vld [vmem:[#allocation2 + $0x60] sm:$0xff]
    %v38 = vld [vmem:[#allocation2 + $0x68] sm:$0xff]
    %v39 = vld [vmem:[#allocation2 + $0x70] sm:$0xff]
    %v40 = vld [vmem:[#allocation2 + $0x78] sm:$0xff]
    %v41 = vxor.u32 %v29, 2147483648
    %v42 = vxor.u32 %v30, 2147483648
    %v43 = vxor.u32 %v31, 2147483648
    %v44 = vxor.u32 %v32, 2147483648
    %v45 = vxor.u32 %v37, 2147483648
    %v46 = vxor.u32 %v38, 2147483648
    %v47 = vxor.u32 %v39, 2147483648
    %v48 = vxor.u32 %v40, 2147483648
    %v49 = vmul.f32 %v41, 1.442695
    %v50 = vpow.pop %v49
    %v51 = vmul.f32 %v42, 1.442695
    %v52 = vpow.pop %v51
    %v53 = vmul.f32 %v43, 1.442695
    %v54 = vpow.pop %v53
    %v55 = vmul.f32 %v44, 1.442695
    %v56 = vpow.pop %v55
    %v57 = vmul.f32 %v45, 1.442695
    %v58 = vpow.pop %v57
    %v59 = vmul.f32 %v46, 1.442695
    %v60 = vpow.pop %v59
    %v61 = vmul.f32 %v47, 1.442695
    %v62 = vpow.pop %v61
    %v63 = vmul.f32 %v48, 1.442695
    %v64 = vpow.pop %v63
    %v65 = vadd.f32 %v50, 1.0
    %v66 = vadd.f32 %v52, 1.0
    %v67 = vadd.f32 %v54, 1.0
    %v68 = vadd.f32 %v56, 1.0
    %v69 = vadd.f32 %v58, 1.0
    %v70 = vadd.f32 %v60, 1.0
    %v71 = vadd.f32 %v62, 1.0
    %v72 = vadd.f32 %v64, 1.0
    %v73 = vrcp.pop %v65
    %v74 = vmul.f32 %v65, %v73
    %v75 = vsub.f32 1.0, %v74
    %v76 = vmul.f32 %v73, %v75
    %v77 = vadd.f32 %v73, %v76
    %vm78 = vweird.f32 %v65
    %vm79 = vweird.f32 %v73
    %vm80 = vmor %vm78, %vm79
    %v81 = vsel %vm80, %v73, %v77
    %v82 = vand.u32 2147483647, %v65
    %vm83 = vcmp.eq.f32.partialorder %v82, 8.507059e+37
    %v84 = vand.u32 %v65, 2147483648
    %v85 = vor.u32 1.1754944e-38, %v84
    %v86 = vsel %vm83, %v85, %v81
    %v87 = vmul.f32 1.0, %v86
    %v88 = vrcp.pop %v66
    %v89 = vmul.f32 %v66, %v88
    %v90 = vsub.f32 1.0, %v89
    %v91 = vmul.f32 %v88, %v90
    %v92 = vadd.f32 %v88, %v91
    %vm93 = vweird.f32 %v66
    %vm94 = vweird.f32 %v88
    %vm95 = vmor %vm93, %vm94
    %v96 = vsel %vm95, %v88, %v92
    %v97 = vand.u32 2147483647, %v66
    %vm98 = vcmp.eq.f32.partialorder %v97, 8.507059e+37
    %v99 = vand.u32 %v66, 2147483648
    %v100 = vor.u32 1.1754944e-38, %v99
    %v101 = vsel %vm98, %v100, %v96
    %v102 = vmul.f32 1.0, %v101
    %v103 = vrcp.pop %v67
    %v104 = vmul.f32 %v67, %v103
    %v105 = vsub.f32 1.0, %v104
    %v106 = vmul.f32 %v103, %v105
    %v107 = vadd.f32 %v103, %v106
    %vm108 = vweird.f32 %v67
    %vm109 = vweird.f32 %v103
    %vm110 = vmor %vm108, %vm109
    %v111 = vsel %vm110, %v103, %v107
    %v112 = vand.u32 2147483647, %v67
    %vm113 = vcmp.eq.f32.partialorder %v112, 8.507059e+37
    %v114 = vand.u32 %v67, 2147483648
    %v115 = vor.u32 1.1754944e-38, %v114
    %v116 = vsel %vm113, %v115, %v111
    %v117 = vmul.f32 1.0, %v116
    %v118 = vrcp.pop %v68
    %v119 = vmul.f32 %v68, %v118
    %v120 = vsub.f32 1.0, %v119
    %v121 = vmul.f32 %v118, %v120
    %v122 = vadd.f32 %v118, %v121
    %vm123 = vweird.f32 %v68
    %vm124 = vweird.f32 %v118
    %vm125 = vmor %vm123, %vm124
    %v126 = vsel %vm125, %v118, %v122
    %v127 = vand.u32 2147483647, %v68
    %vm128 = vcmp.eq.f32.partialorder %v127, 8.507059e+37
    %v129 = vand.u32 %v68, 2147483648
    %v130 = vor.u32 1.1754944e-38, %v129
    %v131 = vsel %vm128, %v130, %v126
    %v132 = vmul.f32 1.0, %v131
    %v133 = vrcp.pop %v69
    %v134 = vmul.f32 %v69, %v133
    %v135 = vsub.f32 1.0, %v134
    %v136 = vmul.f32 %v133, %v135
    %v137 = vadd.f32 %v133, %v136
    %vm138 = vweird.f32 %v69
    %vm139 = vweird.f32 %v133
    %vm140 = vmor %vm138, %vm139
    %v141 = vsel %vm140, %v133, %v137
    %v142 = vand.u32 2147483647, %v69
    %vm143 = vcmp.eq.f32.partialorder %v142, 8.507059e+37
    %v144 = vand.u32 %v69, 2147483648
    %v145 = vor.u32 1.1754944e-38, %v144
    %v146 = vsel %vm143, %v145, %v141
    %v147 = vmul.f32 1.0, %v146
    %v148 = vrcp.pop %v70
    %v149 = vmul.f32 %v70, %v148
    %v150 = vsub.f32 1.0, %v149
    %v151 = vmul.f32 %v148, %v150
    %v152 = vadd.f32 %v148, %v151
    %vm153 = vweird.f32 %v70
    %vm154 = vweird.f32 %v148
    %vm155 = vmor %vm153, %vm154
    %v156 = vsel %vm155, %v148, %v152
    %v157 = vand.u32 2147483647, %v70
    %vm158 = vcmp.eq.f32.partialorder %v157, 8.507059e+37
    %v159 = vand.u32 %v70, 2147483648
    %v160 = vor.u32 1.1754944e-38, %v159
    %v161 = vsel %vm158, %v160, %v156
    %v162 = vmul.f32 1.0, %v161
    %v163 = vrcp.pop %v71
    %v164 = vmul.f32 %v71, %v163
    %v165 = vsub.f32 1.0, %v164
    %v166 = vmul.f32 %v163, %v165
    %v167 = vadd.f32 %v163, %v166
    %vm168 = vweird.f32 %v71
    %vm169 = vweird.f32 %v163
    %vm170 = vmor %vm168, %vm169
    %v171 = vsel %vm170, %v163, %v167
    %v172 = vand.u32 2147483647, %v71
    %vm173 = vcmp.eq.f32.partialorder %v172, 8.507059e+37
    %v174 = vand.u32 %v71, 2147483648
    %v175 = vor.u32 1.1754944e-38, %v174
    %v176 = vsel %vm173, %v175, %v171
    %v177 = vmul.f32 1.0, %v176
    %v178 = vrcp.pop %v72
    %v179 = vmul.f32 %v72, %v178
    %v180 = vsub.f32 1.0, %v179
    %v181 = vmul.f32 %v178, %v180
    %v182 = vadd.f32 %v178, %v181
    %vm183 = vweird.f32 %v72
    %vm184 = vweird.f32 %v178
    %vm185 = vmor %vm183, %vm184
    %v186 = vsel %vm185, %v178, %v182
    %v187 = vand.u32 2147483647, %v72
    %vm188 = vcmp.eq.f32.partialorder %v187, 8.507059e+37
    %v189 = vand.u32 %v72, 2147483648
    %v190 = vor.u32 1.1754944e-38, %v189
    %v191 = vsel %vm188, %v190, %v186
    %v192 = vmul.f32 1.0, %v191
    %v193 = vmul.f32 %v25, %v87
    %v194 = vmul.f32 %v26, %v102
    %v195 = vmul.f32 %v27, %v117
    %v196 = vmul.f32 %v28, %v132
    %v197 = vmul.f32 %v33, %v147
    %v198 = vmul.f32 %v34, %v162
    %v199 = vmul.f32 %v35, %v177
    %v200 = vmul.f32 %v36, %v192
    %201 = vst [vmem:[#allocation5] sm:$0xff] %v193
    %202 = vst [vmem:[#allocation5 + $0x8] sm:$0xff] %v194
    %203 = vst [vmem:[#allocation5 + $0x10] sm:$0xff] %v195
    %204 = vst [vmem:[#allocation5 + $0x18] sm:$0xff] %v196
    %205 = vst [vmem:[#allocation5 + $0x20] sm:$0xff] %v197
    %206 = vst [vmem:[#allocation5 + $0x28] sm:$0xff] %v198
    %207 = vst [vmem:[#allocation5 + $0x30] sm:$0xff] %v199
    %208 = vst [vmem:[#allocation5 + $0x38] sm:$0xff] %v200
    // Predicated region
    $region10: #{tpu_custom_call.1} parent=1 // pred_check
      _
    $region11: #{tpu_custom_call.1} parent=1 // pred_check_branch
      %210 = sbr.rel (0) target = $region13
    $region12: #{tpu_custom_call.1} parent=1 // pred_region
      %212 = vsyncadd [#allocation4], 0
      %s213 = sshll.u32 [#allocation5], 4
      %s214 = int_to_ptr.vmem [resolvable:$true] %s213
      %s215 = sshll.u32 %s1, 4
      %s216 = int_to_ptr.hbm [resolvable:$true] %s215
      %221 = dma.vmem_to_hbm [thread:$0]  %s214, 1024, %s216, [#allocation4], 128, 128, 8
    $region13: #{tpu_custom_call.1} parent=1 // pred_fallthru
      _
    // Predicated region
    $region14: #{tpu_custom_call.1} parent=1 // pred_check
      _
    $region15: #{tpu_custom_call.1} parent=1 // pred_check_branch
      %223 = sbr.rel (0) target = $region17
    $region16: #{tpu_custom_call.1} parent=1 // pred_region
      %225 = dma.done [#allocation4], 1024
    $region17: #{tpu_custom_call.1} parent=1 // pred_fallthru
      _
    %226 = vsyncpa [#allocation3], 1
    %227 = vsyncpa [#allocation4], 1

</llo_original>
